<compile_context>
chip_gen: v5e
topology: v5e:2x2
jax: 0.10.0
libtpu: 0.0.40
codegen_flags: <defaults>
</compile_context>

<pallas_src>
import math

import jax
import jax.numpy as jnp
from jax.experimental import pallas as pl
from jax.experimental.pallas import tpu as pltpu


PACK = 8  # original rows packed per lane-row: K = PACK*V, output lanes = PACK*d_model


def _round_up(x, m):
    return (x + m - 1) // m * m


def _manual_embedding_kernel(x0_ref, t_ref, w_ref, wt_ref, b_ref, out_ref):
    # x0_ref:  (TNp, P*V)   P packed activity rows (dense / one-hot vocab vectors)
    # t_ref:   (TNp, P)     P packed time scalars
    # w_ref:   (P*V, P*D)   blockdiag(sqrt(d_model) * W_act.T), VMEM-resident
    # wt_ref:  (P,   P*D)   blockdiag(sqrt(d_model) * w_time.T), VMEM-resident
    # b_ref:   (1,   P*D)   sqrt(d_model) * (b_act + b_time), tiled P times
    # out_ref: (TNp, P*D)   lane-dense packed output
    acc = jnp.dot(x0_ref[...], w_ref[...], preferred_element_type=jnp.float32)   # MXU, K=128
    acc += jnp.dot(t_ref[...], wt_ref[...], preferred_element_type=jnp.float32)  # MXU, K=8 (tiny)
    out_ref[...] = (acc + b_ref[...]).astype(out_ref.dtype)


def prepare_params(w_act, b_act, w_time, b_time, d_model, pack=PACK):
    """One-time (init-time) transform: fold sqrt(d_model) + biases, build block-diag weights.

    NOTE: must be re-run whenever the underlying Linear weights change.
    """
    scale = math.sqrt(float(d_model))
    wa = scale * w_act.T.astype(jnp.float32)                       # (V, D)
    wt = scale * w_time.reshape(1, d_model).astype(jnp.float32)    # (1, D)
    bb = scale * (b_act + b_time).reshape(1, d_model).astype(jnp.float32)
    eye = jnp.eye(pack, dtype=jnp.float32)
    w_bd = jnp.kron(eye, wa)          # (P*V, P*D) block-diagonal activity weight
    wt_bd = jnp.kron(eye, wt)         # (P,   P*D) block-diagonal time weight
    b_bd = jnp.tile(bb, (1, pack))    # (1,   P*D) fused bias, repeated per packed group
    return w_bd, wt_bd, b_bd


def manual_embedding_forward(x0, x1, w_bd, wt_bd, b_bd, d_model,
                             pack=PACK, packed_row_tile=128):
    """x0: (B, S, 1, V) float, x1: (B, S, 1) float -> (B, S, d_model) float32."""
    B, S, _, V = x0.shape
    P = pack
    K, Dp = w_bd.shape
    assert K == P * V and Dp == P * d_model
    assert packed_row_tile % 8 == 0

    N = B * S
    n_rows_pad = _round_up(N, P * packed_row_tile)
    np_rows = n_rows_pad // P                      # packed rows
    grid = (np_rows // packed_row_tile,)

    # Contiguous (free) reshapes; astype is a no-op for f32 inputs.
    x0f = x0.reshape(N, V).astype(jnp.float32)
    x1f = x1.reshape(N, 1).astype(jnp.float32)
    if n_rows_pad != N:
        # Tail rows: zero-padded, produce bias-only garbage, sliced off below.
        x0f = jnp.pad(x0f, ((0, n_rows_pad - N), (0, 0)))
        x1f = jnp.pad(x1f, ((0, n_rows_pad - N), (0, 0)))
    x0p = x0f.reshape(np_rows, P * V)   # pack P rows into lanes (free reshape)
    tp = x1f.reshape(np_rows, P)

    cost = pl.CostEstimate(
        flops=2 * np_rows * (K + P) * Dp + np_rows * Dp,
        transcendentals=0,
        bytes_accessed=4 * (np_rows * (K + P + Dp) + (K + P + 1) * Dp),
    )

    out = pl.pallas_call(
        _manual_embedding_kernel,
        out_shape=jax.ShapeDtypeStruct((np_rows, Dp), jnp.float32),
        grid=grid,
        in_specs=[
            pl.BlockSpec((packed_row_tile, K), lambda i: (i, 0)),   # packed activity rows (pipelined)
            pl.BlockSpec((packed_row_tile, P), lambda i: (i, 0)),   # packed time scalars (pipelined)
            pl.BlockSpec((K, Dp), lambda i: (0, 0)),                # weights: VMEM-resident
            pl.BlockSpec((P, Dp), lambda i: (0, 0)),
            pl.BlockSpec((1, Dp), lambda i: (0, 0)),
        ],
        out_specs=pl.BlockSpec((packed_row_tile, Dp), lambda i: (i, 0)),
        compiler_params=pltpu.CompilerParams(
            dimension_semantics=("parallel",),
            vmem_limit_bytes=32 * 1024 * 1024,
        ),
        cost_estimate=cost,
    )(x0p, tp, w_bd, wt_bd, b_bd)

    out = out.reshape(n_rows_pad, d_model)   # free row-major unpack: (Np, P*D) -> (Np*P, D)
    if n_rows_pad != N:
        out = out[:N]
    return out.reshape(B, S, d_model)


if __name__ == "__main__":
    # Small shapes consistent with the module. N = B*S = 2048 rows -> 256 packed
    # rows -> grid of 2 tiles of 128 packed rows (1024 original rows per step),
    # so pipelining is exercised and both v7x TensorCores get work.
    d_model = 32
    vocab_size = 16
    B, S = 2, 1024

    key = jax.random.PRNGKey(0)
    k_wa, k_ba, k_wt, k_bt, k_x0, k_x1 = jax.random.split(key, 6)

    # nn.Linear(vocab_size, d_model): weight (D, V), bias (D,), U(-1/sqrt(V), 1/sqrt(V)).
    bound_a = 1.0 / math.sqrt(vocab_size)
    w_act = jax.random.uniform(k_wa, (d_model, vocab_size), jnp.float32, -bound_a, bound_a)
    b_act = jax.random.uniform(k_ba, (d_model,), jnp.float32, -bound_a, bound_a)
    # nn.Linear(1, d_model): weight (D, 1), bias (D,), U(-1, 1) (fan_in = 1).
    w_time = jax.random.uniform(k_wt, (d_model, 1), jnp.float32, -1.0, 1.0)
    b_time = jax.random.uniform(k_bt, (d_model,), jnp.float32, -1.0, 1.0)

    # Inputs: x = (x0 activity vectors, x1 time attribute).
    # x0 is a dense vocab-dim vector per event (one-hot in the real model), shape (B, S, 1, V).
    x0 = jax.random.normal(k_x0, (B, S, 1, vocab_size), jnp.float32)
    x1 = jax.random.normal(k_x1, (B, S, 1), jnp.float32)

    # One-time parameter preparation (fold scale + biases, build block-diag pack).
    w_bd, wt_bd, b_bd = prepare_params(w_act, b_act, w_time, b_time, d_model)

    out = manual_embedding_forward(x0, x1, w_bd, wt_bd, b_bd, d_model,
                                   packed_row_tile=128)
    out = jax.block_until_ready(out)

    # Pure-JAX reference of the PyTorch forward (dropout p=0 -> identity).
    ref = ((jnp.einsum("bsiv,dv->bsid", x0, w_act,
                       precision=jax.lax.Precision.HIGHEST)[:, :, 0, :] + b_act)
           + (x1 * w_time.reshape(1, 1, d_model) + b_time)) * math.sqrt(d_model)

    assert out.shape == (B, S, d_model)
    err = float(jnp.max(jnp.abs(out - ref)))
    assert jnp.allclose(out, ref, atol=2e-3, rtol=2e-3), f"max abs err = {err}"

    print("KERNEL_OK")
</pallas_src>

<mosaic_0001>
module attributes {stable_mosaic.version = 11 : i64} {
  func.func @_manual_embedding_kernel(%arg0: i32, %arg1: memref<128x128xf32, #tpu.memory_space<vmem>>, %arg2: memref<128x8xf32, #tpu.memory_space<vmem>>, %arg3: memref<128x256xf32, #tpu.memory_space<vmem>>, %arg4: memref<8x256xf32, #tpu.memory_space<vmem>>, %arg5: memref<1x256xf32, #tpu.memory_space<vmem>>, %arg6: memref<128x256xf32, #tpu.memory_space<vmem>>) attributes {dimension_semantics = [#tpu.dimension_semantics<parallel>], iteration_bounds = array<i64: 2>, scalar_prefetch = 0 : i64, scratch_operands = 0 : i64, tpu.core_type = #tpu.core_type<tc>, window_params = [{transform_indices = @transform_0, window_bounds = array<i64: 128, 128>}, {transform_indices = @transform_1, window_bounds = array<i64: 128, 8>}, {pipeline_mode = #tpu.pipeline_mode<synchronous>, transform_indices = @transform_2, window_bounds = array<i64: 128, 256>}, {pipeline_mode = #tpu.pipeline_mode<synchronous>, transform_indices = @transform_3, window_bounds = array<i64: 8, 256>}, {pipeline_mode = #tpu.pipeline_mode<synchronous>, transform_indices = @transform_4, window_bounds = array<i64: 1, 256>}, {transform_indices = @transform_5, window_bounds = array<i64: 128, 256>}]} {
    %c0 = arith.constant 0 : index
    %c0_0 = arith.constant 0 : index
    %0 = vector.load %arg1[%c0, %c0_0] : memref<128x128xf32, #tpu.memory_space<vmem>>, vector<128x128xf32>
    %c0_1 = arith.constant 0 : index
    %c0_2 = arith.constant 0 : index
    %1 = vector.load %arg3[%c0_1, %c0_2] : memref<128x256xf32, #tpu.memory_space<vmem>>, vector<128x256xf32>
    %cst = arith.constant dense<0.000000e+00> : vector<128x256xf32>
    %2 = tpu.matmul %0, %1, %cst {dimension_numbers = #tpu.dot_dimension_numbers<[1], [0], [0], [1], [0, 0, 1, 1], [], []>} : vector<128x128xf32>, vector<128x256xf32>, vector<128x256xf32> -> vector<128x256xf32>
    %c0_3 = arith.constant 0 : index
    %c0_4 = arith.constant 0 : index
    %3 = vector.load %arg2[%c0_3, %c0_4] : memref<128x8xf32, #tpu.memory_space<vmem>>, vector<128x8xf32>
    %c0_5 = arith.constant 0 : index
    %c0_6 = arith.constant 0 : index
    %4 = vector.load %arg4[%c0_5, %c0_6] : memref<8x256xf32, #tpu.memory_space<vmem>>, vector<8x256xf32>
    %cst_7 = arith.constant dense<0.000000e+00> : vector<128x256xf32>
    %5 = tpu.matmul %3, %4, %cst_7 {dimension_numbers = #tpu.dot_dimension_numbers<[1], [0], [0], [1], [0, 0, 1, 1], [], []>} : vector<128x8xf32>, vector<8x256xf32>, vector<128x256xf32> -> vector<128x256xf32>
    %6 = arith.addf %2, %5 : vector<128x256xf32>
    %c0_8 = arith.constant 0 : index
    %c0_9 = arith.constant 0 : index
    %7 = vector.load %arg5[%c0_8, %c0_9] : memref<1x256xf32, #tpu.memory_space<vmem>>, vector<1x256xf32>
    %8 = vector.broadcast %7 : vector<1x256xf32> to vector<128x256xf32>
    %9 = arith.addf %6, %8 : vector<128x256xf32>
    %c0_10 = arith.constant 0 : index
    %c0_11 = arith.constant 0 : index
    %10 = vector.load %arg6[%c0_10, %c0_11] : memref<128x256xf32, #tpu.memory_space<vmem>>, vector<128x256xf32>
    tpu.vector_store %arg6[%c0_10, %c0_11], %9 {strides = array<i32>} : memref<128x256xf32, #tpu.memory_space<vmem>>, vector<128x256xf32>,
    return
  }
  func.func @transform_0(%arg0: i32) -> (i32, i32) {
    %c0_i32 = arith.constant 0 : i32
    %c0_i32_0 = arith.constant 0 : i32
    return %arg0, %c0_i32 : i32, i32
  }
  func.func @transform_1(%arg0: i32) -> (i32, i32) {
    %c0_i32 = arith.constant 0 : i32
    %c0_i32_0 = arith.constant 0 : i32
    return %arg0, %c0_i32 : i32, i32
  }
  func.func @transform_2(%arg0: i32) -> (i32, i32) {
    %c0_i32 = arith.constant 0 : i32
    %c0_i32_0 = arith.constant 0 : i32
    %c0_i32_1 = arith.constant 0 : i32
    return %c0_i32, %c0_i32_0 : i32, i32
  }
  func.func @transform_3(%arg0: i32) -> (i32, i32) {
    %c0_i32 = arith.constant 0 : i32
    %c0_i32_0 = arith.constant 0 : i32
    %c0_i32_1 = arith.constant 0 : i32
    return %c0_i32, %c0_i32_0 : i32, i32
  }
  func.func @transform_4(%arg0: i32) -> (i32, i32) {
    %c0_i32 = arith.constant 0 : i32
    %c0_i32_0 = arith.constant 0 : i32
    %c0_i32_1 = arith.constant 0 : i32
    return %c0_i32, %c0_i32_0 : i32, i32
  }
  func.func @transform_5(%arg0: i32) -> (i32, i32) {
    %c0_i32 = arith.constant 0 : i32
    %c0_i32_0 = arith.constant 0 : i32
    return %arg0, %c0_i32 : i32, i32
  }
}

</mosaic_0001>

<llo_original>
// kernel: tpu_custom_call.1
$region0: #{tpu_custom_call.1}
  #allocation0 [shape = 'u32[]', space=smem, size = 0x4, offset = 0x4, fixed_abs, tag = 'smem constant byte address 0x4 - core index']
  #allocation1 [shape = 'u32[72,128]{1,0:T(1,128)}', space=vmem, size = 0x9000, scoped, tag = 'internal scratch']
  %s0 = inlined_call_operand.vmem [shape: f32[256,128], index: 0, kind: input, shape index: {}]
  %s1 = inlined_call_operand.vmem [shape: f32[256,8], index: 1, kind: input, shape index: {}]
  %s2 = inlined_call_operand.hbm [shape: f32[128,256], index: 2, kind: input, shape index: {}]
  %s3 = inlined_call_operand.vmem [shape: f32[8,256], index: 3, kind: input, shape index: {}]
  %s4 = inlined_call_operand.vmem [shape: f32[1,256], index: 4, kind: input, shape index: {}]
  %s5 = inlined_call_operand.hbm [shape: f32[256,256], index: 5, kind: output, shape index: {}]
  %s6 = sld [smem:[#allocation0]]
  $region57: #{tpu_custom_call.1} parent=0
    _
  %s8 = ssub.s32 1, %s6
  %s9 = scalar_select 0, %s8, %s6
  $region1: #{tpu_custom_call.1} parent=0
    #allocation2 [shape = 'u8[131072]{0}', space=vmem, size = 0x20000, scoped, tag = 'input window, operand 2, single buffered']
    #allocation3 [shape = 's32[2]{0}', space=sflag, size = 0x8, scoped, tag = 'scoped memory for tpu_custom_call.1']
    #allocation4 [shape = 's32[2]{0}', space=sflag, size = 0x8, scoped, tag = 'scoped memory for tpu_custom_call.1']
    #allocation5 [shape = 'u8[262144]{0}', space=vmem, size = 0x40000, scoped, tag = 'output window, operand 0']
    %10 = vsyncpa [#allocation3], 0
    %11 = vsyncpa [#allocation4], 0
    %s12 = scalar_lea.sflag [#allocation4], 1
    %13 = vsyncpa %s12, 0
    loop: start=0, step=1, limit=4
    $region2: #{tpu_custom_call.1} parent=1 // loop_pre_header
      _
    $region3: #{tpu_custom_call.1} parent=1 // loop_header
      %s15 = sphi 0, %s19
      %p16 = scmp.ge.s32.totalorder %s15, 4
      %s25 = sphi 0, %s27
      %s28 = sphi 0, %s25
      %s29 = sphi 0, %s28
      %s45 = sphi 0, %s29
      %s51 = sphi 0, %s53
      %s54 = sphi 0, %s51
      %s55 = sphi 0, %s54
      %s71 = sphi 0, %s55
      %s75 = sphi 0, %s75
      %s77 = sphi 0, %s75
      %s78 = sphi 0, %s77
      %s92 = sphi 0, %s78
      %s96 = sphi 0, %s96
      %s98 = sphi 0, %s96
      %s99 = sphi 0, %s98
      %s113 = sphi 0, %s99
      %s117 = sphi 0, %s117
      %s119 = sphi 0, %s117
      %s120 = sphi 0, %s119
      %s134 = sphi 0, %s120
      %s140 = sphi 0, %s142
      %s143 = sphi 0, %s140
      %s144 = sphi 0, %s143
      %s160 = sphi 0, %s144
    $region4: #{tpu_custom_call.1} parent=1 // loop_header_branch
      %18 = sbr.rel (%p16) target = $region8
    $region5: #{tpu_custom_call.1} parent=1 // loop_body
      %s20 = ssub.s32 %s15, 1
      %s21 = ssub.s32 %s15, 2
      %s22 = sadd.s32 %s15, 1
      %s23 = ssub.s32 %s15, %s22
      %p24 = scmp.eq.s32.totalorder %s23, 0
      %s26 = sadd.s32 %s25, 1
      %s27 = scalar_select %p24, %s25, %s26
      %p30 = pneg %p24
      %p31 = scmp.eq.s32.totalorder %s15, 1
      %p32 = por %p30, %p31
      %p33 = scmp.ne.s32.totalorder %s25, %s28
      %p34 = scmp.eq.s32.totalorder %s15, 0
      %p35 = por %p33, %p34
      %p36 = scmp.ne.s32.totalorder %s25, %s28
      %p37 = scmp.eq.s32.totalorder %s20, 1
      %p38 = por %p36, %p37
      %p39 = scmp.ne.s32.totalorder %s28, %s29
      %p40 = scmp.eq.s32.totalorder %s20, 0
      %p41 = por %p39, %p40
      %p42 = scmp.ne.s32.totalorder %s28, %s29
      %p43 = scmp.eq.s32.totalorder %s21, 1
      %p44 = por %p42, %p43
      %p46 = scmp.ne.s32.totalorder %s29, %s45
      %p47 = scmp.eq.s32.totalorder %s21, 0
      %p48 = por %p46, %p47
      %s49 = ssub.s32 %s15, %s22
      %p50 = scmp.eq.s32.totalorder %s49, 0
      %s52 = sadd.s32 %s51, 1
      %s53 = scalar_select %p50, %s51, %s52
      %p56 = pneg %p50
      %p57 = scmp.eq.s32.totalorder %s15, 1
      %p58 = por %p56, %p57
      %p59 = scmp.ne.s32.totalorder %s51, %s54
      %p60 = scmp.eq.s32.totalorder %s15, 0
      %p61 = por %p59, %p60
      %p62 = scmp.ne.s32.totalorder %s51, %s54
      %p63 = scmp.eq.s32.totalorder %s20, 1
      %p64 = por %p62, %p63
      %p65 = scmp.ne.s32.totalorder %s54, %s55
      %p66 = scmp.eq.s32.totalorder %s20, 0
      %p67 = por %p65, %p66
      %p68 = scmp.ne.s32.totalorder %s54, %s55
      %p69 = scmp.eq.s32.totalorder %s21, 1
      %p70 = por %p68, %p69
      %p72 = scmp.ne.s32.totalorder %s55, %s71
      %p73 = scmp.eq.s32.totalorder %s21, 0
      %p74 = por %p72, %p73
      %s76 = sadd.s32 %s75, 1
      %p79 = scmp.eq.s32.totalorder %s15, 1
      %p80 = scmp.ne.s32.totalorder %s75, %s77
      %p81 = scmp.eq.s32.totalorder %s15, 0
      %p82 = por %p80, %p81
      %p83 = scmp.ne.s32.totalorder %s75, %s77
      %p84 = scmp.eq.s32.totalorder %s20, 1
      %p85 = por %p83, %p84
      %p86 = scmp.ne.s32.totalorder %s77, %s78
      %p87 = scmp.eq.s32.totalorder %s20, 0
      %p88 = por %p86, %p87
      %p89 = scmp.ne.s32.totalorder %s77, %s78
      %p90 = scmp.eq.s32.totalorder %s21, 1
      %p91 = por %p89, %p90
      %p93 = scmp.ne.s32.totalorder %s78, %s92
      %p94 = scmp.eq.s32.totalorder %s21, 0
      %p95 = por %p93, %p94
      %s97 = sadd.s32 %s96, 1
      %p100 = scmp.eq.s32.totalorder %s15, 1
      %p101 = scmp.ne.s32.totalorder %s96, %s98
      %p102 = scmp.eq.s32.totalorder %s15, 0
      %p103 = por %p101, %p102
      %p104 = scmp.ne.s32.totalorder %s96, %s98
      %p105 = scmp.eq.s32.totalorder %s20, 1
      %p106 = por %p104, %p105
      %p107 = scmp.ne.s32.totalorder %s98, %s99
      %p108 = scmp.eq.s32.totalorder %s20, 0
      %p109 = por %p107, %p108
      %p110 = scmp.ne.s32.totalorder %s98, %s99
      %p111 = scmp.eq.s32.totalorder %s21, 1
      %p112 = por %p110, %p111
      %p114 = scmp.ne.s32.totalorder %s99, %s113
      %p115 = scmp.eq.s32.totalorder %s21, 0
      %p116 = por %p114, %p115
      %s118 = sadd.s32 %s117, 1
      %p121 = scmp.eq.s32.totalorder %s15, 1
      %p122 = scmp.ne.s32.totalorder %s117, %s119
      %p123 = scmp.eq.s32.totalorder %s15, 0
      %p124 = por %p122, %p123
      %p125 = scmp.ne.s32.totalorder %s117, %s119
      %p126 = scmp.eq.s32.totalorder %s20, 1
      %p127 = por %p125, %p126
      %p128 = scmp.ne.s32.totalorder %s119, %s120
      %p129 = scmp.eq.s32.totalorder %s20, 0
      %p130 = por %p128, %p129
      %p131 = scmp.ne.s32.totalorder %s119, %s120
      %p132 = scmp.eq.s32.totalorder %s21, 1
      %p133 = por %p131, %p132
      %p135 = scmp.ne.s32.totalorder %s120, %s134
      %p136 = scmp.eq.s32.totalorder %s21, 0
      %p137 = por %p135, %p136
      %s138 = ssub.s32 %s15, %s22
      %p139 = scmp.eq.s32.totalorder %s138, 0
      %s141 = sadd.s32 %s140, 1
      %s142 = scalar_select %p139, %s140, %s141
      %p145 = pneg %p139
      %p146 = scmp.eq.s32.totalorder %s15, 1
      %p147 = por %p145, %p146
      %p148 = scmp.ne.s32.totalorder %s140, %s143
      %p149 = scmp.eq.s32.totalorder %s15, 0
      %p150 = por %p148, %p149
      %p151 = scmp.ne.s32.totalorder %s140, %s143
      %p152 = scmp.eq.s32.totalorder %s20, 1
      %p153 = por %p151, %p152
      %p154 = scmp.ne.s32.totalorder %s143, %s144
      %p155 = scmp.eq.s32.totalorder %s20, 0
      %p156 = por %p154, %p155
      %p157 = scmp.ne.s32.totalorder %s143, %s144
      %p158 = scmp.eq.s32.totalorder %s21, 1
      %p159 = por %p157, %p158
      %p161 = scmp.ne.s32.totalorder %s144, %s160
      %p162 = scmp.eq.s32.totalorder %s21, 0
      %p163 = por %p161, %p162
      %p164 = scmp.le.s32.totalorder 1, %s15
      %p165 = scmp.lt.s32.totalorder %s15, 3
      %p166 = pnand %p164, %p165
      %p167 = pneg %p166
      // Predicated region
      $region9: #{tpu_custom_call.1} parent=5 // pred_check
        _
      $region10: #{tpu_custom_call.1} parent=5 // pred_check_branch
        %169 = sbr.rel (%p166) target = $region12
      $region11: #{tpu_custom_call.1} parent=5 // pred_region
        %s170 = ssub.s32 %s15, 1
        // Predicated region
        $region13: #{tpu_custom_call.1} parent=11 // pred_check
          %p171 = pneg %p88
        $region14: #{tpu_custom_call.1} parent=11 // pred_check_branch
          %173 = sbr.rel (%p171) target = $region16
        $region15: #{tpu_custom_call.1} parent=11 // pred_region
          %175 = vsyncadd [#allocation3], 0
          %s176 = sshll.u32 %s2, 4
          %s177 = int_to_ptr.hbm [resolvable:$true] %s176
          %s178 = sshll.u32 [#allocation2], 4
          %s179 = int_to_ptr.vmem [resolvable:$true] %s178
          %184 = dma.hbm_to_vmem [thread:$0]  %s177, 4096, %s179, [#allocation3], 256, 256, 16
        $region16: #{tpu_custom_call.1} parent=11 // pred_fallthru
          _
        // Predicated region
        $region17: #{tpu_custom_call.1} parent=11 // pred_check
          %p185 = pneg %p109
        $region18: #{tpu_custom_call.1} parent=11 // pred_check_branch
          %187 = sbr.rel (%p185) target = $region20
        $region19: #{tpu_custom_call.1} parent=11 // pred_region
          _
        $region20: #{tpu_custom_call.1} parent=11 // pred_fallthru
          _
        // Predicated region
        $region21: #{tpu_custom_call.1} parent=11 // pred_check
          %p188 = pneg %p130
        $region22: #{tpu_custom_call.1} parent=11 // pred_check_branch
          %190 = sbr.rel (%p188) target = $region24
        $region23: #{tpu_custom_call.1} parent=11 // pred_region
          _
        $region24: #{tpu_custom_call.1} parent=11 // pred_fallthru
          _
      $region12: #{tpu_custom_call.1} parent=5 // pred_fallthru
        _
      %p191 = scmp.lt.s32.totalorder %s15, 2
      // Predicated region
      $region25: #{tpu_custom_call.1} parent=5 // pred_check
        %p192 = pneg %p191
      $region26: #{tpu_custom_call.1} parent=5 // pred_check_branch
        %194 = sbr.rel (%p192) target = $region28
      $region27: #{tpu_custom_call.1} parent=5 // pred_region
        // Predicated region
        $region29: #{tpu_custom_call.1} parent=27 // pred_check
          %p195 = pneg %p35
        $region30: #{tpu_custom_call.1} parent=27 // pred_check_branch
          %197 = sbr.rel (%p195) target = $region32
        $region31: #{tpu_custom_call.1} parent=27 // pred_region
          %s198 = smul.u32 16, %s15
          %p199 = scmp.lt.s32.totalorder %s198, 31
          %s200 = scalar_select %p199, %s198, 31
          %s201 = smul.addr %s200, 8
          %s202 = scalar_lea.vmem %s0, %s201
          %s203 = smul.u32 16, %s15
        $region32: #{tpu_custom_call.1} parent=27 // pred_fallthru
          _
        // Predicated region
        $region33: #{tpu_custom_call.1} parent=27 // pred_check
          %p204 = pneg %p61
        $region34: #{tpu_custom_call.1} parent=27 // pred_check_branch
          %206 = sbr.rel (%p204) target = $region36
        $region35: #{tpu_custom_call.1} parent=27 // pred_region
          %s207 = smul.u32 16, %s15
          %p208 = scmp.lt.s32.totalorder %s207, 31
          %s209 = scalar_select %p208, %s207, 31
          %s210 = smul.addr %s209, 8
          %s211 = scalar_lea.vmem %s1, %s210
          %s212 = smul.u32 16, %s15
        $region36: #{tpu_custom_call.1} parent=27 // pred_fallthru
          _
      $region28: #{tpu_custom_call.1} parent=5 // pred_fallthru
        _
      %p213 = scmp.le.s32.totalorder 1, %s15
      %p214 = scmp.lt.s32.totalorder %s15, 3
      %p215 = pnand %p213, %p214
      %p216 = pneg %p215
      // Predicated region
      $region37: #{tpu_custom_call.1} parent=5 // pred_check
        _
      $region38: #{tpu_custom_call.1} parent=5 // pred_check_branch
        %218 = sbr.rel (%p215) target = $region40
      $region39: #{tpu_custom_call.1} parent=5 // pred_region
        %s219 = ssub.s32 %s15, 1
        // Predicated region
        $region41: #{tpu_custom_call.1} parent=39 // pred_check
          %p220 = pneg %p88
        $region42: #{tpu_custom_call.1} parent=39 // pred_check_branch
          %222 = sbr.rel (%p220) target = $region44
        $region43: #{tpu_custom_call.1} parent=39 // pred_region
          %224 = dma.done [#allocation3], 4096
        $region44: #{tpu_custom_call.1} parent=39 // pred_fallthru
          _
        %s225 = smul.u32 16, %s20
        %p226 = scmp.lt.s32.totalorder %s225, 31
        %s227 = scalar_select %p226, %s225, 31
        %s228 = smul.addr %s227, 8
        %s229 = scalar_lea.vmem %s0, %s228
        %p230 = pneg %p41
        %p231 = pneg %p38
        %s232 = smul.u32 16, %s20
        %p233 = scmp.lt.s32.totalorder %s232, 31
        %s234 = scalar_select %p233, %s232, 31
        %s235 = smul.addr %s234, 8
        %s236 = scalar_lea.vmem %s1, %s235
        %p237 = pneg %p67
        %p238 = pneg %p64
        %p239 = pneg %p88
        %p240 = pneg %p85
        %p241 = pneg %p109
        %p242 = pneg %p106
        %p243 = pneg %p130
        %p244 = pneg %p127
        %p245 = pneg %p156
        %p246 = pneg %p153
        %s247 = sand.u32 %s143, 1
        %s248 = scalar_lea.sflag [#allocation4], %s247
        %s249 = sand.u32 %s143, 1
        %s250 = smul.addr %s249, 256
        %s251 = scalar_lea.vmem [#allocation5], %s250
        %s252 = smul.u32 16, %s20
        %p253 = scmp.lt.s32.totalorder %s252, 31
        %s254 = scalar_select %p253, %s252, 31
        %s255 = smul.addr %s254, 8
        %s256 = scalar_lea.vmem %s0, %s255
        %s257 = smul.u32 16, %s20
        %s258 = smul.u32 16, %s20
        %p259 = scmp.lt.s32.totalorder %s258, 31
        %s260 = scalar_select %p259, %s258, 31
        %s261 = smul.addr %s260, 8
        %s262 = scalar_lea.vmem %s1, %s261
        %s263 = smul.u32 16, %s20
        %s264 = smul.u32 16, %s20
        %v265 = vld [vmem:[%s256] sm:$0xff]
        %v266 = vld [vmem:[%s256 + $0x8] sm:$0xff]
        %v267 = vld [vmem:[%s256 + $0x10] sm:$0xff]
        %v268 = vld [vmem:[%s256 + $0x18] sm:$0xff]
        %v269 = vld [vmem:[%s256 + $0x20] sm:$0xff]
        %v270 = vld [vmem:[%s256 + $0x28] sm:$0xff]
        %v271 = vld [vmem:[%s256 + $0x30] sm:$0xff]
        %v272 = vld [vmem:[%s256 + $0x38] sm:$0xff]
        %v273 = vld [vmem:[%s256 + $0x40] sm:$0xff]
        %v274 = vld [vmem:[%s256 + $0x48] sm:$0xff]
        %v275 = vld [vmem:[%s256 + $0x50] sm:$0xff]
        %v276 = vld [vmem:[%s256 + $0x58] sm:$0xff]
        %v277 = vld [vmem:[%s256 + $0x60] sm:$0xff]
        %v278 = vld [vmem:[%s256 + $0x68] sm:$0xff]
        %v279 = vld [vmem:[%s256 + $0x70] sm:$0xff]
        %v280 = vld [vmem:[%s256 + $0x78] sm:$0xff]
        %v281 = vld [vmem:[#allocation2] sm:$0xff]
        %v282 = vld [vmem:[#allocation2 + $0x8] sm:$0xff]
        %v283 = vld [vmem:[#allocation2 + $0x10] sm:$0xff]
        %v284 = vld [vmem:[#allocation2 + $0x18] sm:$0xff]
        %v285 = vld [vmem:[#allocation2 + $0x20] sm:$0xff]
        %v286 = vld [vmem:[#allocation2 + $0x28] sm:$0xff]
        %v287 = vld [vmem:[#allocation2 + $0x30] sm:$0xff]
        %v288 = vld [vmem:[#allocation2 + $0x38] sm:$0xff]
        %v289 = vld [vmem:[#allocation2 + $0x40] sm:$0xff]
        %v290 = vld [vmem:[#allocation2 + $0x48] sm:$0xff]
        %v291 = vld [vmem:[#allocation2 + $0x50] sm:$0xff]
        %v292 = vld [vmem:[#allocation2 + $0x58] sm:$0xff]
        %v293 = vld [vmem:[#allocation2 + $0x60] sm:$0xff]
        %v294 = vld [vmem:[#allocation2 + $0x68] sm:$0xff]
        %v295 = vld [vmem:[#allocation2 + $0x70] sm:$0xff]
        %v296 = vld [vmem:[#allocation2 + $0x78] sm:$0xff]
        %v297 = vld [vmem:[#allocation2 + $0x80] sm:$0xff]
        %v298 = vld [vmem:[#allocation2 + $0x88] sm:$0xff]
        %v299 = vld [vmem:[#allocation2 + $0x90] sm:$0xff]
        %v300 = vld [vmem:[#allocation2 + $0x98] sm:$0xff]
        %v301 = vld [vmem:[#allocation2 + $0xa0] sm:$0xff]
        %v302 = vld [vmem:[#allocation2 + $0xa8] sm:$0xff]
        %v303 = vld [vmem:[#allocation2 + $0xb0] sm:$0xff]
        %v304 = vld [vmem:[#allocation2 + $0xb8] sm:$0xff]
        %v305 = vld [vmem:[#allocation2 + $0xc0] sm:$0xff]
        %v306 = vld [vmem:[#allocation2 + $0xc8] sm:$0xff]
        %v307 = vld [vmem:[#allocation2 + $0xd0] sm:$0xff]
        %v308 = vld [vmem:[#allocation2 + $0xd8] sm:$0xff]
        %v309 = vld [vmem:[#allocation2 + $0xe0] sm:$0xff]
        %v310 = vld [vmem:[#allocation2 + $0xe8] sm:$0xff]
        %v311 = vld [vmem:[#allocation2 + $0xf0] sm:$0xff]
        %v312 = vld [vmem:[#allocation2 + $0xf8] sm:$0xff]
        %v313 = vld [vmem:[%s262] sm:$0xff]
        %v314 = vld [vmem:[%s262 + $0x8] sm:$0xff]
        %v315 = vld [vmem:[%s262 + $0x10] sm:$0xff]
        %v316 = vld [vmem:[%s262 + $0x18] sm:$0xff]
        %v317 = vld [vmem:[%s262 + $0x20] sm:$0xff]
        %v318 = vld [vmem:[%s262 + $0x28] sm:$0xff]
        %v319 = vld [vmem:[%s262 + $0x30] sm:$0xff]
        %v320 = vld [vmem:[%s262 + $0x38] sm:$0xff]
        %v321 = vld [vmem:[%s262 + $0x40] sm:$0xff]
        %v322 = vld [vmem:[%s262 + $0x48] sm:$0xff]
        %v323 = vld [vmem:[%s262 + $0x50] sm:$0xff]
        %v324 = vld [vmem:[%s262 + $0x58] sm:$0xff]
        %v325 = vld [vmem:[%s262 + $0x60] sm:$0xff]
        %v326 = vld [vmem:[%s262 + $0x68] sm:$0xff]
        %v327 = vld [vmem:[%s262 + $0x70] sm:$0xff]
        %v328 = vld [vmem:[%s262 + $0x78] sm:$0xff]
        %v329 = vld [vmem:[%s3] sm:$0xff]
        %v330 = vld [vmem:[%s3 + $0x8] sm:$0xff]
        %vm331 = vcmask 64512
        %v333 = vsel %vm331, %v313, 0
        %v336 = vsel %vm331, %v314, 0
        %v339 = vsel %vm331, %v315, 0
        %v342 = vsel %vm331, %v316, 0
        %v345 = vsel %vm331, %v317, 0
        %v348 = vsel %vm331, %v318, 0
        %v351 = vsel %vm331, %v319, 0
        %v354 = vsel %vm331, %v320, 0
        %v357 = vsel %vm331, %v321, 0
        %v360 = vsel %vm331, %v322, 0
        %v363 = vsel %vm331, %v323, 0
        %v366 = vsel %vm331, %v324, 0
        %v369 = vsel %vm331, %v325, 0
        %v372 = vsel %vm331, %v326, 0
        %v375 = vsel %vm331, %v327, 0
        %v378 = vsel %vm331, %v328, 0
        %380 = vmatpush.msra.mxu0 0.0
        %381 = vmatpush.msra.mxu0 0.0
        %382 = vmatpush.msra.mxu0 0.0
        %383 = vmatpush.msra.mxu0 0.0
        %384 = vmatpush.msra.mxu0 0.0
        %385 = vmatpush.msra.mxu0 0.0
        %386 = vmatpush.msra.mxu0 0.0
        %387 = vmatpush.msra.mxu0 0.0
        %388 = vmatpush.msra.mxu0 0.0
        %389 = vmatpush.msra.mxu0 0.0
        %390 = vmatpush.msra.mxu0 0.0
        %391 = vmatpush.msra.mxu0 0.0
        %392 = vmatpush.msra.mxu0 0.0
        %393 = vmatpush.msra.mxu0 0.0
        %394 = vmatpush.msra.mxu0 0.0
        %395 = vmatpush.msra.mxu0 %v329
        %396 = vmatmul.f32.gmra.mxu0 %v333
        %v397 = vpop.f32.mrf.mxu0
        %v398 = vadd.f32 0.0, %v397
        %399 = vmatmul.f32.gmra.mxu0 %v336
        %v400 = vpop.f32.mrf.mxu0
        %v401 = vadd.f32 0.0, %v400
        %402 = vmatmul.f32.gmra.mxu0 %v339
        %v403 = vpop.f32.mrf.mxu0
        %v404 = vadd.f32 0.0, %v403
        %405 = vmatmul.f32.gmra.mxu0 %v342
        %v406 = vpop.f32.mrf.mxu0
        %v407 = vadd.f32 0.0, %v406
        %408 = vmatmul.f32.gmra.mxu0 %v345
        %v409 = vpop.f32.mrf.mxu0
        %v410 = vadd.f32 0.0, %v409
        %411 = vmatmul.f32.gmra.mxu0 %v348
        %v412 = vpop.f32.mrf.mxu0
        %v413 = vadd.f32 0.0, %v412
        %414 = vmatmul.f32.gmra.mxu0 %v351
        %v415 = vpop.f32.mrf.mxu0
        %v416 = vadd.f32 0.0, %v415
        %417 = vmatmul.f32.gmra.mxu0 %v354
        %v418 = vpop.f32.mrf.mxu0
        %v419 = vadd.f32 0.0, %v418
        %420 = vmatmul.f32.gmra.mxu0 %v357
        %v421 = vpop.f32.mrf.mxu0
        %v422 = vadd.f32 0.0, %v421
        %423 = vmatmul.f32.gmra.mxu0 %v360
        %v424 = vpop.f32.mrf.mxu0
        %v425 = vadd.f32 0.0, %v424
        %426 = vmatmul.f32.gmra.mxu0 %v363
        %v427 = vpop.f32.mrf.mxu0
        %v428 = vadd.f32 0.0, %v427
        %429 = vmatmul.f32.gmra.mxu0 %v366
        %v430 = vpop.f32.mrf.mxu0
        %v431 = vadd.f32 0.0, %v430
        %432 = vmatmul.f32.gmra.mxu0 %v369
        %v433 = vpop.f32.mrf.mxu0
        %v434 = vadd.f32 0.0, %v433
        %435 = vmatmul.f32.gmra.mxu0 %v372
        %v436 = vpop.f32.mrf.mxu0
        %v437 = vadd.f32 0.0, %v436
        %438 = vmatmul.f32.gmra.mxu0 %v375
        %v439 = vpop.f32.mrf.mxu0
        %v440 = vadd.f32 0.0, %v439
        %441 = vmatmul.f32.gmra.mxu0 %v378
        %v442 = vpop.f32.mrf.mxu0
        %v443 = vadd.f32 0.0, %v442
        %444 = vdwg.mxu0
        %445 = vmatpush.msra.mxu0 0.0
        %446 = vmatpush.msra.mxu0 0.0
        %447 = vmatpush.msra.mxu0 0.0
        %448 = vmatpush.msra.mxu0 0.0
        %449 = vmatpush.msra.mxu0 0.0
        %450 = vmatpush.msra.mxu0 0.0
        %451 = vmatpush.msra.mxu0 0.0
        %452 = vmatpush.msra.mxu0 0.0
        %453 = vmatpush.msra.mxu0 0.0
        %454 = vmatpush.msra.mxu0 0.0
        %455 = vmatpush.msra.mxu0 0.0
        %456 = vmatpush.msra.mxu0 0.0
        %457 = vmatpush.msra.mxu0 0.0
        %458 = vmatpush.msra.mxu0 0.0
        %459 = vmatpush.msra.mxu0 0.0
        %460 = vmatpush.msra.mxu0 %v330
        %461 = vmatmul.f32.gmra.mxu0 %v333
        %v462 = vpop.f32.mrf.mxu0
        %v463 = vadd.f32 0.0, %v462
        %464 = vmatmul.f32.gmra.mxu0 %v336
        %v465 = vpop.f32.mrf.mxu0
        %v466 = vadd.f32 0.0, %v465
        %467 = vmatmul.f32.gmra.mxu0 %v339
        %v468 = vpop.f32.mrf.mxu0
        %v469 = vadd.f32 0.0, %v468
        %470 = vmatmul.f32.gmra.mxu0 %v342
        %v471 = vpop.f32.mrf.mxu0
        %v472 = vadd.f32 0.0, %v471
        %473 = vmatmul.f32.gmra.mxu0 %v345
        %v474 = vpop.f32.mrf.mxu0
        %v475 = vadd.f32 0.0, %v474
        %476 = vmatmul.f32.gmra.mxu0 %v348
        %v477 = vpop.f32.mrf.mxu0
        %v478 = vadd.f32 0.0, %v477
        %479 = vmatmul.f32.gmra.mxu0 %v351
        %v480 = vpop.f32.mrf.mxu0
        %v481 = vadd.f32 0.0, %v480
        %482 = vmatmul.f32.gmra.mxu0 %v354
        %v483 = vpop.f32.mrf.mxu0
        %v484 = vadd.f32 0.0, %v483
        %485 = vmatmul.f32.gmra.mxu0 %v357
        %v486 = vpop.f32.mrf.mxu0
        %v487 = vadd.f32 0.0, %v486
        %488 = vmatmul.f32.gmra.mxu0 %v360
        %v489 = vpop.f32.mrf.mxu0
        %v490 = vadd.f32 0.0, %v489
        %491 = vmatmul.f32.gmra.mxu0 %v363
        %v492 = vpop.f32.mrf.mxu0
        %v493 = vadd.f32 0.0, %v492
        %494 = vmatmul.f32.gmra.mxu0 %v366
        %v495 = vpop.f32.mrf.mxu0
        %v496 = vadd.f32 0.0, %v495
        %497 = vmatmul.f32.gmra.mxu0 %v369
        %v498 = vpop.f32.mrf.mxu0
        %v499 = vadd.f32 0.0, %v498
        %500 = vmatmul.f32.gmra.mxu0 %v372
        %v501 = vpop.f32.mrf.mxu0
        %v502 = vadd.f32 0.0, %v501
        %503 = vmatmul.f32.gmra.mxu0 %v375
        %v504 = vpop.f32.mrf.mxu0
        %v505 = vadd.f32 0.0, %v504
        %506 = vmatmul.f32.gmra.mxu0 %v378
        %v507 = vpop.f32.mrf.mxu0
        %v508 = vadd.f32 0.0, %v507
        %509 = vdwg.mxu0
        %510 = vmatpush.msra.mxu0 %v311
        %511 = vmatpush.msra.mxu0 %v309
        %512 = vmatpush.msra.mxu0 %v307
        %513 = vmatpush.msra.mxu0 %v305
        %514 = vmatpush.msra.mxu0 %v303
        %515 = vmatpush.msra.mxu0 %v301
        %516 = vmatpush.msra.mxu0 %v299
        %517 = vmatpush.msra.mxu0 %v297
        %518 = vmatpush.msra.mxu0 %v295
        %519 = vmatpush.msra.mxu0 %v293
        %520 = vmatpush.msra.mxu0 %v291
        %521 = vmatpush.msra.mxu0 %v289
        %522 = vmatpush.msra.mxu0 %v287
        %523 = vmatpush.msra.mxu0 %v285
        %524 = vmatpush.msra.mxu0 %v283
        %525 = vmatpush.msra.mxu0 %v281
        %526 = vmatmul.f32.gmra.mxu0 %v265
        %v527 = vpop.f32.mrf.mxu0
        %v528 = vadd.f32 %v398, %v527
        %529 = vmatmul.f32.gmra.mxu0 %v266
        %v530 = vpop.f32.mrf.mxu0
        %v531 = vadd.f32 %v401, %v530
        %532 = vmatmul.f32.gmra.mxu0 %v267
        %v533 = vpop.f32.mrf.mxu0
        %v534 = vadd.f32 %v404, %v533
        %535 = vmatmul.f32.gmra.mxu0 %v268
        %v536 = vpop.f32.mrf.mxu0
        %v537 = vadd.f32 %v407, %v536
        %538 = vmatmul.f32.gmra.mxu0 %v269
        %v539 = vpop.f32.mrf.mxu0
        %v540 = vadd.f32 %v410, %v539
        %541 = vmatmul.f32.gmra.mxu0 %v270
        %v542 = vpop.f32.mrf.mxu0
        %v543 = vadd.f32 %v413, %v542
        %544 = vmatmul.f32.gmra.mxu0 %v271
        %v545 = vpop.f32.mrf.mxu0
        %v546 = vadd.f32 %v416, %v545
        %547 = vmatmul.f32.gmra.mxu0 %v272
        %v548 = vpop.f32.mrf.mxu0
        %v549 = vadd.f32 %v419, %v548
        %550 = vmatmul.f32.gmra.mxu0 %v273
        %v551 = vpop.f32.mrf.mxu0
        %v552 = vadd.f32 %v422, %v551
        %553 = vmatmul.f32.gmra.mxu0 %v274
        %v554 = vpop.f32.mrf.mxu0
        %v555 = vadd.f32 %v425, %v554
        %556 = vmatmul.f32.gmra.mxu0 %v275
        %v557 = vpop.f32.mrf.mxu0
        %v558 = vadd.f32 %v428, %v557
        %559 = vmatmul.f32.gmra.mxu0 %v276
        %v560 = vpop.f32.mrf.mxu0
        %v561 = vadd.f32 %v431, %v560
        %562 = vmatmul.f32.gmra.mxu0 %v277
        %v563 = vpop.f32.mrf.mxu0
        %v564 = vadd.f32 %v434, %v563
        %565 = vmatmul.f32.gmra.mxu0 %v278
        %v566 = vpop.f32.mrf.mxu0
        %v567 = vadd.f32 %v437, %v566
        %568 = vmatmul.f32.gmra.mxu0 %v279
        %v569 = vpop.f32.mrf.mxu0
        %v570 = vadd.f32 %v440, %v569
        %571 = vmatmul.f32.gmra.mxu0 %v280
        %v572 = vpop.f32.mrf.mxu0
        %v573 = vadd.f32 %v443, %v572
        %574 = vdwg.mxu0
        %575 = vmatpush.msra.mxu0 %v312
        %576 = vmatpush.msra.mxu0 %v310
        %577 = vmatpush.msra.mxu0 %v308
        %578 = vmatpush.msra.mxu0 %v306
        %579 = vmatpush.msra.mxu0 %v304
        %580 = vmatpush.msra.mxu0 %v302
        %581 = vmatpush.msra.mxu0 %v300
        %582 = vmatpush.msra.mxu0 %v298
        %583 = vmatpush.msra.mxu0 %v296
        %584 = vmatpush.msra.mxu0 %v294
        %585 = vmatpush.msra.mxu0 %v292
        %586 = vmatpush.msra.mxu0 %v290
        %587 = vmatpush.msra.mxu0 %v288
        %588 = vmatpush.msra.mxu0 %v286
        %589 = vmatpush.msra.mxu0 %v284
        %590 = vmatpush.msra.mxu0 %v282
        %591 = vmatmul.f32.gmra.mxu0 %v265
        %v592 = vpop.f32.mrf.mxu0
        %v593 = vadd.f32 %v463, %v592
        %594 = vmatmul.f32.gmra.mxu0 %v266
        %v595 = vpop.f32.mrf.mxu0
        %v596 = vadd.f32 %v466, %v595
        %597 = vmatmul.f32.gmra.mxu0 %v267
        %v598 = vpop.f32.mrf.mxu0
        %v599 = vadd.f32 %v469, %v598
        %600 = vmatmul.f32.gmra.mxu0 %v268
        %v601 = vpop.f32.mrf.mxu0
        %v602 = vadd.f32 %v472, %v601
        %603 = vmatmul.f32.gmra.mxu0 %v269
        %v604 = vpop.f32.mrf.mxu0
        %v605 = vadd.f32 %v475, %v604
        %606 = vmatmul.f32.gmra.mxu0 %v270
        %v607 = vpop.f32.mrf.mxu0
        %v608 = vadd.f32 %v478, %v607
        %609 = vmatmul.f32.gmra.mxu0 %v271
        %v610 = vpop.f32.mrf.mxu0
        %v611 = vadd.f32 %v481, %v610
        %612 = vmatmul.f32.gmra.mxu0 %v272
        %v613 = vpop.f32.mrf.mxu0
        %v614 = vadd.f32 %v484, %v613
        %615 = vmatmul.f32.gmra.mxu0 %v273
        %v616 = vpop.f32.mrf.mxu0
        %v617 = vadd.f32 %v487, %v616
        %618 = vmatmul.f32.gmra.mxu0 %v274
        %v619 = vpop.f32.mrf.mxu0
        %v620 = vadd.f32 %v490, %v619
        %621 = vmatmul.f32.gmra.mxu0 %v275
        %v622 = vpop.f32.mrf.mxu0
        %v623 = vadd.f32 %v493, %v622
        %624 = vmatmul.f32.gmra.mxu0 %v276
        %v625 = vpop.f32.mrf.mxu0
        %v626 = vadd.f32 %v496, %v625
        %627 = vmatmul.f32.gmra.mxu0 %v277
        %v628 = vpop.f32.mrf.mxu0
        %v629 = vadd.f32 %v499, %v628
        %630 = vmatmul.f32.gmra.mxu0 %v278
        %v631 = vpop.f32.mrf.mxu0
        %v632 = vadd.f32 %v502, %v631
        %633 = vmatmul.f32.gmra.mxu0 %v279
        %v634 = vpop.f32.mrf.mxu0
        %v635 = vadd.f32 %v505, %v634
        %636 = vmatmul.f32.gmra.mxu0 %v280
        %v637 = vpop.f32.mrf.mxu0
        %v638 = vadd.f32 %v508, %v637
        %639 = vdwg.mxu0
        %v640 = vld [vmem:[%s4] sm:$0x3]
        %v642 = vperm.slane %v640, 0
        %v643 = vperm.slane %v640, 1
        %v646 = vadd.f32 %v528, %v642
        %v647 = vadd.f32 %v593, %v643
        %v648 = vadd.f32 %v531, %v642
        %v649 = vadd.f32 %v596, %v643
        %v650 = vadd.f32 %v534, %v642
        %v651 = vadd.f32 %v599, %v643
        %v652 = vadd.f32 %v537, %v642
        %v653 = vadd.f32 %v602, %v643
        %v654 = vadd.f32 %v540, %v642
        %v655 = vadd.f32 %v605, %v643
        %v656 = vadd.f32 %v543, %v642
        %v657 = vadd.f32 %v608, %v643
        %v658 = vadd.f32 %v546, %v642
        %v659 = vadd.f32 %v611, %v643
        %v660 = vadd.f32 %v549, %v642
        %v661 = vadd.f32 %v614, %v643
        %v662 = vadd.f32 %v552, %v642
        %v663 = vadd.f32 %v617, %v643
        %v664 = vadd.f32 %v555, %v642
        %v665 = vadd.f32 %v620, %v643
        %v666 = vadd.f32 %v558, %v642
        %v667 = vadd.f32 %v623, %v643
        %v668 = vadd.f32 %v561, %v642
        %v669 = vadd.f32 %v626, %v643
        %v670 = vadd.f32 %v564, %v642
        %v671 = vadd.f32 %v629, %v643
        %v672 = vadd.f32 %v567, %v642
        %v673 = vadd.f32 %v632, %v643
        %v674 = vadd.f32 %v570, %v642
        %v675 = vadd.f32 %v635, %v643
        %v676 = vadd.f32 %v573, %v642
        %v677 = vadd.f32 %v638, %v643
        %678 = vst [vmem:[%s251] sm:$0xff] %v646
        %679 = vst [vmem:[%s251 + $0x8] sm:$0xff] %v647
        %680 = vst [vmem:[%s251 + $0x10] sm:$0xff] %v648
        %681 = vst [vmem:[%s251 + $0x18] sm:$0xff] %v649
        %682 = vst [vmem:[%s251 + $0x20] sm:$0xff] %v650
        %683 = vst [vmem:[%s251 + $0x28] sm:$0xff] %v651
        %684 = vst [vmem:[%s251 + $0x30] sm:$0xff] %v652
        %685 = vst [vmem:[%s251 + $0x38] sm:$0xff] %v653
        %686 = vst [vmem:[%s251 + $0x40] sm:$0xff] %v654
        %687 = vst [vmem:[%s251 + $0x48] sm:$0xff] %v655
        %688 = vst [vmem:[%s251 + $0x50] sm:$0xff] %v656
        %689 = vst [vmem:[%s251 + $0x58] sm:$0xff] %v657
        %690 = vst [vmem:[%s251 + $0x60] sm:$0xff] %v658
        %691 = vst [vmem:[%s251 + $0x68] sm:$0xff] %v659
        %692 = vst [vmem:[%s251 + $0x70] sm:$0xff] %v660
        %693 = vst [vmem:[%s251 + $0x78] sm:$0xff] %v661
        %694 = vst [vmem:[%s251 + $0x80] sm:$0xff] %v662
        %695 = vst [vmem:[%s251 + $0x88] sm:$0xff] %v663
        %696 = vst [vmem:[%s251 + $0x90] sm:$0xff] %v664
        %697 = vst [vmem:[%s251 + $0x98] sm:$0xff] %v665
        %698 = vst [vmem:[%s251 + $0xa0] sm:$0xff] %v666
        %699 = vst [vmem:[%s251 + $0xa8] sm:$0xff] %v667
        %700 = vst [vmem:[%s251 + $0xb0] sm:$0xff] %v668
        %701 = vst [vmem:[%s251 + $0xb8] sm:$0xff] %v669
        %702 = vst [vmem:[%s251 + $0xc0] sm:$0xff] %v670
        %703 = vst [vmem:[%s251 + $0xc8] sm:$0xff] %v671
        %704 = vst [vmem:[%s251 + $0xd0] sm:$0xff] %v672
        %705 = vst [vmem:[%s251 + $0xd8] sm:$0xff] %v673
        %706 = vst [vmem:[%s251 + $0xe0] sm:$0xff] %v674
        %707 = vst [vmem:[%s251 + $0xe8] sm:$0xff] %v675
        %708 = vst [vmem:[%s251 + $0xf0] sm:$0xff] %v676
        %709 = vst [vmem:[%s251 + $0xf8] sm:$0xff] %v677
        %s710 = sand.u32 %s143, 1
        %s711 = scalar_lea.sflag [#allocation4], %s710
        %s712 = sand.u32 %s143, 1
        %s713 = smul.addr %s712, 256
        %s714 = scalar_lea.vmem [#allocation5], %s713
        // Predicated region
        $region45: #{tpu_custom_call.1} parent=39 // pred_check
          %p715 = pneg %p153
        $region46: #{tpu_custom_call.1} parent=39 // pred_check_branch
          %717 = sbr.rel (%p715) target = $region48
        $region47: #{tpu_custom_call.1} parent=39 // pred_region
          %s718 = smul.u32 16, %s20
          %720 = vsyncadd %s711, 0
          %s721 = smul.addr %s718, 2
          %s722 = smul.addr %s721, 8
          %s723 = scalar_lea.hbm %s5, %s722
          %s724 = sshll.u32 %s714, 4
          %s725 = int_to_ptr.vmem [resolvable:$true] %s724
          %s726 = sshll.u32 %s723, 4
          %s727 = int_to_ptr.hbm [resolvable:$true] %s726
          %732 = dma.vmem_to_hbm [thread:$0]  %s725, 4096, %s727, %s711, 256, 256, 16
        $region48: #{tpu_custom_call.1} parent=39 // pred_fallthru
          _
      $region40: #{tpu_custom_call.1} parent=5 // pred_fallthru
        _
      %p733 = scmp.le.s32.totalorder 2, %s15
      // Predicated region
      $region49: #{tpu_custom_call.1} parent=5 // pred_check
        %p734 = pneg %p733
      $region50: #{tpu_custom_call.1} parent=5 // pred_check_branch
        %736 = sbr.rel (%p734) target = $region52
      $region51: #{tpu_custom_call.1} parent=5 // pred_region
        %s737 = ssub.s32 %s15, 2
        // Predicated region
        $region53: #{tpu_custom_call.1} parent=51 // pred_check
          %p738 = pneg %p159
        $region54: #{tpu_custom_call.1} parent=51 // pred_check_branch
          %740 = sbr.rel (%p738) target = $region56
        $region55: #{tpu_custom_call.1} parent=51 // pred_region
          %s741 = sand.u32 %s144, 1
          %s742 = scalar_lea.sflag [#allocation4], %s741
          %s743 = sand.u32 %s144, 1
          %s744 = smul.addr %s743, 256
          %s745 = scalar_lea.vmem [#allocation5], %s744
          %747 = dma.done %s742, 4096
        $region56: #{tpu_custom_call.1} parent=51 // pred_fallthru
          _
      $region52: #{tpu_custom_call.1} parent=5 // pred_fallthru
        _
    $region6: #{tpu_custom_call.1} parent=1 // loop_footer
      %s19 = sadd.s32 1, %s15
    $region7: #{tpu_custom_call.1} parent=1 // loop_footer_branch
      %14 = sbr.rel target = $region3
    $region8: #{tpu_custom_call.1} parent=1 // loop_exit
      _
    %748 = vsyncpa [#allocation3], 1
    %s749 = scalar_lea.sflag [#allocation3], 1
    %750 = vsyncpa %s749, 1
    %751 = vsyncpa [#allocation4], 1
    %s752 = scalar_lea.sflag [#allocation4], 1
    %753 = vsyncpa %s752, 1

</llo_original>
